<compile_context>
chip_gen: v7x
topology: tpu7x:2x2x1
jax: 0.10.0
libtpu: 0.0.40
codegen_flags: <defaults>
</compile_context>

<pallas_src>
import math

import jax
import jax.numpy as jnp
from jax.experimental import pallas as pl
from jax.experimental.pallas import tpu as pltpu


def _round_up(x, m):
    return ((x + m - 1) // m) * m


def _cdiv(a, b):
    return -(-a // b)


def _vmem_tile_bytes(rows, cols, dtype):
    """In-VMEM footprint of a (rows, cols) tile incl. sublane/lane padding."""
    it = jnp.dtype(dtype).itemsize
    sub = max(8, 32 // it)
    return _round_up(max(rows, 1), sub) * _round_up(max(cols, 1), 128) * it


def _token_embed_kernel(a_ref, b_ref, w_ref, o_ref):
    # a_ref: (1, T, c_in) = x_halo[s : s+T]      (row i -> x[(s+i-1) mod L])
    # b_ref: (1, T, c_in) = x_halo[s+T : s+2T]   (only its first 2 rows are used)
    # w_ref: (3, c_in, d_model) with w_ref[k, c, d] = conv_weight[d, c, k]
    # o_ref: (1, T, d_model)
    cdt = a_ref.dtype
    # Build the 3 tap operands. Shifts are done in f32 (tiny (T, c_in) VPU work, a no-op
    # for f32 inputs) to keep packed-dtype sublane relayouts layout-friendly.
    a = a_ref[0].astype(jnp.float32)
    b2 = b_ref[0, 0:2, :].astype(jnp.float32)
    x_m1 = a                                            # x[t-1]  (tap k=0)
    x_0 = jnp.concatenate([a[1:], b2[0:1]], axis=0)     # x[t]    (tap k=1)
    x_p1 = jnp.concatenate([a[2:], b2[0:2]], axis=0)    # x[t+1]  (tap k=2)

    acc = jnp.dot(x_m1.astype(cdt), w_ref[0], preferred_element_type=jnp.float32)
    acc += jnp.dot(x_0.astype(cdt), w_ref[1], preferred_element_type=jnp.float32)
    acc += jnp.dot(x_p1.astype(cdt), w_ref[2], preferred_element_type=jnp.float32)
    o_ref[0] = acc.astype(o_ref.dtype)


def token_embedding(x, weight, *, tile_l=1024, compute_dtype=None, out_dtype=None):
    """TokenEmbedding forward.

    x:      (B, L, c_in)        module input layout (before its internal permute)
    weight: (d_model, c_in, 3)  torch Conv1d weight layout
    returns (B, L, d_model)  in `out_dtype` (defaults to compute_dtype or x.dtype)
    """
    B, L, c_in = x.shape
    d_model = weight.shape[0]

    cdt = jnp.dtype(compute_dtype) if compute_dtype is not None else jnp.dtype(x.dtype)
    odt = jnp.dtype(out_dtype) if out_dtype is not None else cdt

    x = x.astype(cdt)
    # per-tap weights: w_t[k, c, d] = weight[d, c, k]
    w_t = jnp.transpose(weight, (2, 1, 0)).astype(cdt)

    itemsize = jnp.dtype(cdt).itemsize
    sub = max(8, 32 // itemsize)            # sublane multiple: 8 (f32) / 16 (bf16) / 32 (int8)

    # ---- tile selection -------------------------------------------------------
    T = min(int(tile_l), _round_up(L, sub))
    T = max(sub, (T // sub) * sub)
    min_T = max(sub, min(128, T))

    # enough grid steps for v7x's two TensorCores + pipeline depth
    while T > min_T and B * _cdiv(L, T) < 8:
        T = max(min_T, ((T // 2) // sub) * sub)

    # VMEM budget derived from the actual part (v7x: 64 MiB per TensorCore)
    try:
        vmem_cap = int(pltpu.get_tpu_info().vmem_capacity_bytes)
    except Exception:
        vmem_cap = 64 << 20
    budget = int(vmem_cap * 0.6)

    def vmem_need(t):
        return (
            4 * _vmem_tile_bytes(t, c_in, cdt)              # 2 halo specs x double buffer
            + 2 * _vmem_tile_bytes(t, d_model, odt)         # output tile x double buffer
            + 6 * _vmem_tile_bytes(c_in, d_model, cdt)      # resident weight (3 taps, dbl buf)
            + _vmem_tile_bytes(t, d_model, jnp.float32)     # f32 accumulator temp
            + 3 * _vmem_tile_bytes(t, c_in, jnp.float32)    # f32 tap temps
        )

    while T > min_T and vmem_need(T) > budget:
        T = max(min_T, ((T // 2) // sub) * sub)

    nL = _cdiv(L, T)

    # ---- circular halo input (one concatenate over the small x) --------------
    # x_halo[:, j] = x[:, (j-1) mod L] for j < L+2; zero-padded so the "next block"
    # spec (block index l+1) always stays in bounds: total length = (nL+1)*T.
    Lh = (nL + 1) * T
    parts = [x[:, L - 1:L, :], x, x[:, 0:1, :]]
    if Lh > L + 2:
        parts.append(jnp.zeros((B, Lh - (L + 2), c_in), cdt))
    x_halo = jnp.concatenate(parts, axis=1)

    vmem_limit = int(min(max(2 * vmem_need(T), 32 << 20), int(vmem_cap * 0.7)))

    out = pl.pallas_call(
        _token_embed_kernel,
        out_shape=jax.ShapeDtypeStruct((B, L, d_model), odt),
        grid_spec=pltpu.PrefetchScalarGridSpec(
            num_scalar_prefetch=0,
            grid=(B, nL),
            in_specs=[
                pl.BlockSpec((1, T, c_in), lambda b, l: (b, l, 0)),       # current halo tile
                pl.BlockSpec((1, T, c_in), lambda b, l: (b, l + 1, 0)),   # next tile (2 rows used)
                pl.BlockSpec((3, c_in, d_model), lambda b, l: (0, 0, 0)),  # resident weight
            ],
            out_specs=pl.BlockSpec((1, T, d_model), lambda b, l: (b, l, 0)),
        ),
        compiler_params=pltpu.CompilerParams(
            dimension_semantics=("parallel", "parallel"),
            vmem_limit_bytes=vmem_limit,
        ),
    )(x_halo, x_halo, w_t)

    return out


def init_weight(key, c_in, d_model):
    # kaiming_normal_(mode='fan_in', nonlinearity='leaky_relu'), default a=0.01
    fan_in = c_in * 3
    gain = math.sqrt(2.0 / (1.0 + 0.01 ** 2))
    std = gain / math.sqrt(fan_in)
    return jax.random.normal(key, (d_model, c_in, 3), jnp.float32) * std


def _reference(x, weight):
    # y[b, t, d] = sum_k sum_c x[b, (t+k-1) mod L, c] * weight[d, c, k]
    L = x.shape[1]
    x_pad = jnp.concatenate([x[:, -1:, :], x, x[:, :1, :]], axis=1)
    taps = jnp.stack([x_pad[:, k:k + L, :] for k in range(3)], axis=0)  # (3,B,L,c_in)
    return jnp.einsum('kblc,dck->bld', taps, weight)


if __name__ == "__main__":
    key = jax.random.PRNGKey(0)
    kx, kw, kx2, kw2, kx3 = jax.random.split(key, 5)

    # 1) small f32 case (tile == L, no ragged blocks)
    B, L, c_in, d_model = 2, 8, 4, 32
    x = jax.random.normal(kx, (B, L, c_in), jnp.float32)
    w = init_weight(kw, c_in, d_model)
    y = jax.block_until_ready(token_embedding(x, w))
    y_ref = _reference(x, w)
    assert y.shape == (B, L, d_model)
    assert jnp.allclose(y, y_ref, atol=1e-5, rtol=1e-5)

    # 2) ragged length (L not a multiple of the tile -> Pallas clips the last block,
    #    no post-kernel slice) and non-128 d_model
    B2, L2, c2, d2 = 1, 20, 3, 48
    x2 = jax.random.normal(kx2, (B2, L2, c2), jnp.float32)
    w2 = init_weight(kw2, c2, d2)
    y2 = jax.block_until_ready(token_embedding(x2, w2, tile_l=16))
    assert y2.shape == (B2, L2, d2)
    assert jnp.allclose(y2, _reference(x2, w2), atol=1e-5, rtol=1e-5)

    # 3) bf16 compute + bf16 output path (halves the dominant HBM write)
    x3 = jax.random.normal(kx3, (2, 32, c_in), jnp.float32)
    y3 = jax.block_until_ready(token_embedding(x3, w, compute_dtype=jnp.bfloat16))
    assert y3.dtype == jnp.bfloat16
    assert jnp.allclose(y3.astype(jnp.float32), _reference(x3, w), atol=1e-1, rtol=5e-2)

    print("KERNEL_OK")
</pallas_src>

<mosaic_0001>
module attributes {stable_mosaic.version = 11 : i64} {
  func.func @_token_embed_kernel(%arg0: i32, %arg1: i32, %arg2: memref<1x8x4xf32, #tpu.memory_space<vmem>>, %arg3: memref<1x8x4xf32, #tpu.memory_space<vmem>>, %arg4: memref<3x4x32xf32, #tpu.memory_space<vmem>>, %arg5: memref<1x8x32xf32, #tpu.memory_space<vmem>>) attributes {dimension_semantics = [#tpu.dimension_semantics<parallel>, #tpu.dimension_semantics<parallel>], iteration_bounds = array<i64: 2, 1>, scalar_prefetch = 0 : i64, scratch_operands = 0 : i64, tpu.core_type = #tpu.core_type<tc>, window_params = [{transform_indices = @transform_0, window_bounds = array<i64: 1, 8, 4>}, {transform_indices = @transform_1, window_bounds = array<i64: 1, 8, 4>}, {pipeline_mode = #tpu.pipeline_mode<synchronous>, transform_indices = @transform_2, window_bounds = array<i64: 3, 4, 32>}, {transform_indices = @transform_3, window_bounds = array<i64: 1, 8, 32>}]} {
    %c0 = arith.constant 0 : index
    %c0_0 = arith.constant 0 : index
    %c0_1 = arith.constant 0 : index
    %0 = vector.load %arg2[%c0, %c0_0, %c0_1] : memref<1x8x4xf32, #tpu.memory_space<vmem>>, vector<1x8x4xf32>
    %1 = vector.shape_cast %0 : vector<1x8x4xf32> to vector<8x4xf32>
    %c0_2 = arith.constant 0 : index
    %c0_3 = arith.constant 0 : index
    %c0_4 = arith.constant 0 : index
    %2 = vector.load %arg3[%c0_2, %c0_3, %c0_4] : memref<1x8x4xf32, #tpu.memory_space<vmem>>, vector<1x2x4xf32>
    %3 = vector.shape_cast %2 : vector<1x2x4xf32> to vector<2x4xf32>
    %4 = vector.extract_strided_slice %1 {offsets = [1, 0], sizes = [7, 4], strides = [1, 1]} : vector<8x4xf32> to vector<7x4xf32>
    %5 = vector.extract_strided_slice %3 {offsets = [0, 0], sizes = [1, 4], strides = [1, 1]} : vector<2x4xf32> to vector<1x4xf32>
    %6 = tpu.concatenate %4, %5 in 0 : vector<7x4xf32>, vector<1x4xf32> -> vector<8x4xf32>
    %7 = vector.extract_strided_slice %1 {offsets = [2, 0], sizes = [6, 4], strides = [1, 1]} : vector<8x4xf32> to vector<6x4xf32>
    %8 = tpu.concatenate %7, %3 in 0 : vector<6x4xf32>, vector<2x4xf32> -> vector<8x4xf32>
    %c0_5 = arith.constant 0 : index
    %c0_6 = arith.constant 0 : index
    %c0_7 = arith.constant 0 : index
    %9 = vector.load %arg4[%c0_5, %c0_6, %c0_7] : memref<3x4x32xf32, #tpu.memory_space<vmem>>, vector<1x4x32xf32>
    %10 = vector.shape_cast %9 : vector<1x4x32xf32> to vector<4x32xf32>
    %cst = arith.constant dense<0.000000e+00> : vector<8x32xf32>
    %11 = tpu.matmul %1, %10, %cst {dimension_numbers = #tpu.dot_dimension_numbers<[1], [0], [0], [1], [0, 0, 1, 1], [], []>} : vector<8x4xf32>, vector<4x32xf32>, vector<8x32xf32> -> vector<8x32xf32>
    %c1 = arith.constant 1 : index
    %c0_8 = arith.constant 0 : index
    %c0_9 = arith.constant 0 : index
    %12 = vector.load %arg4[%c1, %c0_8, %c0_9] : memref<3x4x32xf32, #tpu.memory_space<vmem>>, vector<1x4x32xf32>
    %13 = vector.shape_cast %12 : vector<1x4x32xf32> to vector<4x32xf32>
    %cst_10 = arith.constant dense<0.000000e+00> : vector<8x32xf32>
    %14 = tpu.matmul %6, %13, %cst_10 {dimension_numbers = #tpu.dot_dimension_numbers<[1], [0], [0], [1], [0, 0, 1, 1], [], []>} : vector<8x4xf32>, vector<4x32xf32>, vector<8x32xf32> -> vector<8x32xf32>
    %15 = arith.addf %11, %14 : vector<8x32xf32>
    %c2 = arith.constant 2 : index
    %c0_11 = arith.constant 0 : index
    %c0_12 = arith.constant 0 : index
    %16 = vector.load %arg4[%c2, %c0_11, %c0_12] : memref<3x4x32xf32, #tpu.memory_space<vmem>>, vector<1x4x32xf32>
    %17 = vector.shape_cast %16 : vector<1x4x32xf32> to vector<4x32xf32>
    %cst_13 = arith.constant dense<0.000000e+00> : vector<8x32xf32>
    %18 = tpu.matmul %8, %17, %cst_13 {dimension_numbers = #tpu.dot_dimension_numbers<[1], [0], [0], [1], [0, 0, 1, 1], [], []>} : vector<8x4xf32>, vector<4x32xf32>, vector<8x32xf32> -> vector<8x32xf32>
    %19 = arith.addf %15, %18 : vector<8x32xf32>
    %c0_14 = arith.constant 0 : index
    %c0_15 = arith.constant 0 : index
    %c0_16 = arith.constant 0 : index
    %20 = vector.load %arg5[%c0_14, %c0_15, %c0_16] : memref<1x8x32xf32, #tpu.memory_space<vmem>>, vector<1x8x32xf32>
    %21 = vector.shape_cast %20 : vector<1x8x32xf32> to vector<8x32xf32>
    %22 = vector.shape_cast %19 : vector<8x32xf32> to vector<1x8x32xf32>
    tpu.vector_store %arg5[%c0_14, %c0_15, %c0_16], %22 {strides = array<i32>} : memref<1x8x32xf32, #tpu.memory_space<vmem>>, vector<1x8x32xf32>,
    return
  }
  func.func @transform_0(%arg0: i32, %arg1: i32) -> (i32, i32, i32) {
    %c0_i32 = arith.constant 0 : i32
    %c0_i32_0 = arith.constant 0 : i32
    return %arg0, %arg1, %c0_i32 : i32, i32, i32
  }
  func.func @transform_1(%arg0: i32, %arg1: i32) -> (i32, i32, i32) {
    %c1_i32 = arith.constant 1 : i32
    %0 = arith.addi %arg1, %c1_i32 : i32
    %c0_i32 = arith.constant 0 : i32
    %c0_i32_0 = arith.constant 0 : i32
    return %arg0, %0, %c0_i32 : i32, i32, i32
  }
  func.func @transform_2(%arg0: i32, %arg1: i32) -> (i32, i32, i32) {
    %c0_i32 = arith.constant 0 : i32
    %c0_i32_0 = arith.constant 0 : i32
    %c0_i32_1 = arith.constant 0 : i32
    %c0_i32_2 = arith.constant 0 : i32
    return %c0_i32, %c0_i32_0, %c0_i32_1 : i32, i32, i32
  }
  func.func @transform_3(%arg0: i32, %arg1: i32) -> (i32, i32, i32) {
    %c0_i32 = arith.constant 0 : i32
    %c0_i32_0 = arith.constant 0 : i32
    return %arg0, %arg1, %c0_i32 : i32, i32, i32
  }
}

</mosaic_0001>

<llo_original>
// kernel: tpu_custom_call.1
$region0: #{tpu_custom_call.1}
  #allocation0 [shape = 'u32[]', space=smem, size = 0x4, offset = 0x4, fixed_abs, tag = 'smem constant byte address 0x4 - core index']
  #allocation1 [shape = 'u32[144,128]{1,0:T(1,128)}', space=vmem, size = 0x12000, scoped, tag = 'internal scratch']
  %s0 = inlined_call_operand.vmem [shape: f32[2,16,4], index: 0, kind: input, shape index: {}]
  %s1 = inlined_call_operand.vmem [shape: f32[2,16,4], index: 1, kind: input, shape index: {}]
  %s2 = inlined_call_operand.vmem [shape: f32[3,4,32], index: 2, kind: input, shape index: {}]
  %s3 = inlined_call_operand.hbm [shape: f32[2,8,32], index: 3, kind: output, shape index: {}]
  %s4 = sld [smem:[#allocation0]]
  $region45: #{tpu_custom_call.1} parent=0
    _
  %s6 = ssub.s32 1, %s4
  %s7 = scalar_select 0, %s6, %s4
  $region1: #{tpu_custom_call.1} parent=0
    #allocation2 [shape = 'u8[8192]{0}', space=vmem, size = 0x2000, scoped, tag = 'output window, operand 0']
    #allocation3 [shape = 's32[2]{0}', space=sflag, size = 0x8, scoped, tag = 'scoped memory for tpu_custom_call.1']
    %8 = vsyncpa [#allocation3], 0
    %s9 = scalar_lea.sflag [#allocation3], 1
    %10 = vsyncpa %s9, 0
    loop: start=0, step=1, limit=4
    $region2: #{tpu_custom_call.1} parent=1 // loop_pre_header
      _
    $region3: #{tpu_custom_call.1} parent=1 // loop_header
      %s12 = sphi 0, %s16
      %p13 = scmp.ge.s32.totalorder %s12, 4
      %s19 = sphi 0, %s31
      %s20 = sphi 0, %s27
      %s21 = sphi 0, %s19
      %s22 = sphi 0, %s20
      %s23 = sphi 0, %s21
      %s24 = sphi 0, %s22
      %s36 = sphi 0, %s38
      %s39 = sphi 0, %s36
      %s40 = sphi 0, %s39
      %s56 = sphi 0, %s40
      %s66 = sphi 0, %s68
      %s69 = sphi 0, %s66
      %s70 = sphi 0, %s69
      %s86 = sphi 0, %s70
      %s90 = sphi 0, %s90
      %s92 = sphi 0, %s90
      %s93 = sphi 0, %s92
      %s107 = sphi 0, %s93
      %s115 = sphi 0, %s117
      %s118 = sphi 0, %s115
      %s119 = sphi 0, %s118
      %s135 = sphi 0, %s119
    $region4: #{tpu_custom_call.1} parent=1 // loop_header_branch
      %15 = sbr.rel (%p13) target = $region8
    $region5: #{tpu_custom_call.1} parent=1 // loop_body
      %s17 = ssub.s32 %s12, 1
      %s18 = ssub.s32 %s12, 2
      %s25 = sadd.s32 1, %s20
      %p26 = scmp.ge.s32.totalorder %s25, 1
      %s27 = scalar_select %p26, 0, %s25
      %s28 = sadd.s32 1, %s19
      %s29 = scalar_select %p26, %s28, %s19
      %p30 = scmp.ge.s32.totalorder %s29, 2
      %s31 = scalar_select %p30, 0, %s29
      %s32 = ssub.s32 %s19, %s31
      %s33 = ssub.s32 %s20, %s27
      %s34 = sor.u32 %s32, %s33
      %p35 = scmp.eq.s32.totalorder %s34, 0
      %s37 = sadd.s32 %s36, 1
      %s38 = scalar_select %p35, %s36, %s37
      %p41 = pneg %p35
      %p42 = scmp.eq.s32.totalorder %s12, 1
      %p43 = por %p41, %p42
      %p44 = scmp.ne.s32.totalorder %s36, %s39
      %p45 = scmp.eq.s32.totalorder %s12, 0
      %p46 = por %p44, %p45
      %p47 = scmp.ne.s32.totalorder %s36, %s39
      %p48 = scmp.eq.s32.totalorder %s17, 1
      %p49 = por %p47, %p48
      %p50 = scmp.ne.s32.totalorder %s39, %s40
      %p51 = scmp.eq.s32.totalorder %s17, 0
      %p52 = por %p50, %p51
      %p53 = scmp.ne.s32.totalorder %s39, %s40
      %p54 = scmp.eq.s32.totalorder %s18, 1
      %p55 = por %p53, %p54
      %p57 = scmp.ne.s32.totalorder %s40, %s56
      %p58 = scmp.eq.s32.totalorder %s18, 0
      %p59 = por %p57, %p58
      %s60 = sadd.s32 %s20, 1
      %s61 = sadd.s32 %s27, 1
      %s62 = ssub.s32 %s19, %s31
      %s63 = ssub.s32 %s60, %s61
      %s64 = sor.u32 %s62, %s63
      %p65 = scmp.eq.s32.totalorder %s64, 0
      %s67 = sadd.s32 %s66, 1
      %s68 = scalar_select %p65, %s66, %s67
      %p71 = pneg %p65
      %p72 = scmp.eq.s32.totalorder %s12, 1
      %p73 = por %p71, %p72
      %p74 = scmp.ne.s32.totalorder %s66, %s69
      %p75 = scmp.eq.s32.totalorder %s12, 0
      %p76 = por %p74, %p75
      %p77 = scmp.ne.s32.totalorder %s66, %s69
      %p78 = scmp.eq.s32.totalorder %s17, 1
      %p79 = por %p77, %p78
      %p80 = scmp.ne.s32.totalorder %s69, %s70
      %p81 = scmp.eq.s32.totalorder %s17, 0
      %p82 = por %p80, %p81
      %p83 = scmp.ne.s32.totalorder %s69, %s70
      %p84 = scmp.eq.s32.totalorder %s18, 1
      %p85 = por %p83, %p84
      %p87 = scmp.ne.s32.totalorder %s70, %s86
      %p88 = scmp.eq.s32.totalorder %s18, 0
      %p89 = por %p87, %p88
      %s91 = sadd.s32 %s90, 1
      %p94 = scmp.eq.s32.totalorder %s12, 1
      %p95 = scmp.ne.s32.totalorder %s90, %s92
      %p96 = scmp.eq.s32.totalorder %s12, 0
      %p97 = por %p95, %p96
      %p98 = scmp.ne.s32.totalorder %s90, %s92
      %p99 = scmp.eq.s32.totalorder %s17, 1
      %p100 = por %p98, %p99
      %p101 = scmp.ne.s32.totalorder %s92, %s93
      %p102 = scmp.eq.s32.totalorder %s17, 0
      %p103 = por %p101, %p102
      %p104 = scmp.ne.s32.totalorder %s92, %s93
      %p105 = scmp.eq.s32.totalorder %s18, 1
      %p106 = por %p104, %p105
      %p108 = scmp.ne.s32.totalorder %s93, %s107
      %p109 = scmp.eq.s32.totalorder %s18, 0
      %p110 = por %p108, %p109
      %s111 = ssub.s32 %s19, %s31
      %s112 = ssub.s32 %s20, %s27
      %s113 = sor.u32 %s111, %s112
      %p114 = scmp.eq.s32.totalorder %s113, 0
      %s116 = sadd.s32 %s115, 1
      %s117 = scalar_select %p114, %s115, %s116
      %p120 = pneg %p114
      %p121 = scmp.eq.s32.totalorder %s12, 1
      %p122 = por %p120, %p121
      %p123 = scmp.ne.s32.totalorder %s115, %s118
      %p124 = scmp.eq.s32.totalorder %s12, 0
      %p125 = por %p123, %p124
      %p126 = scmp.ne.s32.totalorder %s115, %s118
      %p127 = scmp.eq.s32.totalorder %s17, 1
      %p128 = por %p126, %p127
      %p129 = scmp.ne.s32.totalorder %s118, %s119
      %p130 = scmp.eq.s32.totalorder %s17, 0
      %p131 = por %p129, %p130
      %p132 = scmp.ne.s32.totalorder %s118, %s119
      %p133 = scmp.eq.s32.totalorder %s18, 1
      %p134 = por %p132, %p133
      %p136 = scmp.ne.s32.totalorder %s119, %s135
      %p137 = scmp.eq.s32.totalorder %s18, 0
      %p138 = por %p136, %p137
      %p139 = scmp.le.s32.totalorder 1, %s12
      %p140 = scmp.lt.s32.totalorder %s12, 3
      %p141 = pnand %p139, %p140
      %p142 = pneg %p141
      // Predicated region
      $region9: #{tpu_custom_call.1} parent=5 // pred_check
        _
      $region10: #{tpu_custom_call.1} parent=5 // pred_check_branch
        %144 = sbr.rel (%p141) target = $region12
      $region11: #{tpu_custom_call.1} parent=5 // pred_region
        %s145 = ssub.s32 %s12, 1
        // Predicated region
        $region13: #{tpu_custom_call.1} parent=11 // pred_check
          %p146 = pneg %p103
        $region14: #{tpu_custom_call.1} parent=11 // pred_check_branch
          %148 = sbr.rel (%p146) target = $region16
        $region15: #{tpu_custom_call.1} parent=11 // pred_region
          _
        $region16: #{tpu_custom_call.1} parent=11 // pred_fallthru
          _
      $region12: #{tpu_custom_call.1} parent=5 // pred_fallthru
        _
      %p149 = scmp.lt.s32.totalorder %s12, 2
      // Predicated region
      $region17: #{tpu_custom_call.1} parent=5 // pred_check
        %p150 = pneg %p149
      $region18: #{tpu_custom_call.1} parent=5 // pred_check_branch
        %152 = sbr.rel (%p150) target = $region20
      $region19: #{tpu_custom_call.1} parent=5 // pred_region
        // Predicated region
        $region21: #{tpu_custom_call.1} parent=19 // pred_check
          %p153 = pneg %p46
        $region22: #{tpu_custom_call.1} parent=19 // pred_check_branch
          %155 = sbr.rel (%p153) target = $region24
        $region23: #{tpu_custom_call.1} parent=19 // pred_region
          %p156 = scmp.lt.s32.totalorder %s19, 1
          %s157 = scalar_select %p156, %s19, 1
          %p158 = scmp.lt.s32.totalorder %s20, 1
          %s159 = scalar_select %p158, %s20, 1
          %s160 = smul.addr %s157, 2
          %s161 = sadd.s32 %s159, %s160
          %s162 = smul.addr %s161, 8
          %s163 = scalar_lea.vmem %s0, %s162
        $region24: #{tpu_custom_call.1} parent=19 // pred_fallthru
          _
        // Predicated region
        $region25: #{tpu_custom_call.1} parent=19 // pred_check
          %p164 = pneg %p76
        $region26: #{tpu_custom_call.1} parent=19 // pred_check_branch
          %166 = sbr.rel (%p164) target = $region28
        $region27: #{tpu_custom_call.1} parent=19 // pred_region
          %s167 = sadd.s32 %s20, 1
          %p168 = scmp.lt.s32.totalorder %s19, 1
          %s169 = scalar_select %p168, %s19, 1
          %p170 = scmp.lt.s32.totalorder %s167, 1
          %s171 = scalar_select %p170, %s167, 1
          %s172 = smul.addr %s169, 2
          %s173 = sadd.s32 %s171, %s172
          %s174 = smul.addr %s173, 8
          %s175 = scalar_lea.vmem %s1, %s174
          %s176 = sadd.s32 %s20, 1
        $region28: #{tpu_custom_call.1} parent=19 // pred_fallthru
          _
      $region20: #{tpu_custom_call.1} parent=5 // pred_fallthru
        _
      %p177 = scmp.le.s32.totalorder 1, %s12
      %p178 = scmp.lt.s32.totalorder %s12, 3
      %p179 = pnand %p177, %p178
      %p180 = pneg %p179
      // Predicated region
      $region29: #{tpu_custom_call.1} parent=5 // pred_check
        _
      $region30: #{tpu_custom_call.1} parent=5 // pred_check_branch
        %182 = sbr.rel (%p179) target = $region32
      $region31: #{tpu_custom_call.1} parent=5 // pred_region
        %s183 = ssub.s32 %s12, 1
        %p184 = scmp.lt.s32.totalorder %s21, 1
        %s185 = scalar_select %p184, %s21, 1
        %p186 = scmp.lt.s32.totalorder %s22, 1
        %s187 = scalar_select %p186, %s22, 1
        %s188 = smul.addr %s185, 2
        %s189 = sadd.s32 %s187, %s188
        %s190 = smul.addr %s189, 8
        %s191 = scalar_lea.vmem %s0, %s190
        %p192 = pneg %p52
        %p193 = pneg %p49
        %s194 = sadd.s32 %s22, 1
        %p195 = scmp.lt.s32.totalorder %s21, 1
        %s196 = scalar_select %p195, %s21, 1
        %p197 = scmp.lt.s32.totalorder %s194, 1
        %s198 = scalar_select %p197, %s194, 1
        %s199 = smul.addr %s196, 2
        %s200 = sadd.s32 %s198, %s199
        %s201 = smul.addr %s200, 8
        %s202 = scalar_lea.vmem %s1, %s201
        %p203 = pneg %p82
        %p204 = pneg %p79
        %p205 = pneg %p103
        %p206 = pneg %p100
        %p207 = pneg %p131
        %p208 = pneg %p128
        %s209 = sand.u32 %s118, 1
        %s210 = scalar_lea.sflag [#allocation3], %s209
        %s211 = sand.u32 %s118, 1
        %s212 = smul.addr %s211, 8
        %s213 = scalar_lea.vmem [#allocation2], %s212
        %p214 = scmp.lt.s32.totalorder %s21, 1
        %s215 = scalar_select %p214, %s21, 1
        %p216 = scmp.lt.s32.totalorder %s22, 1
        %s217 = scalar_select %p216, %s22, 1
        %s218 = smul.addr %s215, 2
        %s219 = sadd.s32 %s217, %s218
        %s220 = smul.addr %s219, 8
        %s221 = scalar_lea.vmem %s0, %s220
        %s222 = sadd.s32 %s22, 1
        %p223 = scmp.lt.s32.totalorder %s21, 1
        %s224 = scalar_select %p223, %s21, 1
        %p225 = scmp.lt.s32.totalorder %s222, 1
        %s226 = scalar_select %p225, %s222, 1
        %s227 = smul.addr %s224, 2
        %s228 = sadd.s32 %s226, %s227
        %s229 = smul.addr %s228, 8
        %s230 = scalar_lea.vmem %s1, %s229
        %s231 = sadd.s32 %s22, 1
        %v232 = vld [vmem:[%s221] sm:$0xff]
        %v233 = vld [vmem:[%s230] sm:$0x3]
        %v235 = vrot.slane %v232, 1
        %v238 = vrot.slane %v233, 1
        %vm240 = vcmask 1046528
        %v241 = vsel %vm240, %v235, %v238
        %v242 = vrot.slane %v232, 2
        %v244 = vrot.slane %v233, 2
        %vm246 = vcmask 1045504
        %v247 = vsel %vm246, %v242, %v244
        %v248 = vld [vmem:[%s2] sm:$0xf]
        %s249 = scalar_lea.vmem %s2, 4
        %v250 = vld [vmem:[%s249] sm:$0xf]
        %vm251 = vcmask 31744
        %v253 = vsel %vm251, %v241, 0
        %vm255 = vcmask 1043456
        %v257 = vsel %vm255, %v250, 0
        %259 = vmatprep.subr.mxu0 0.0
        %260 = vmatpush1.msra.mxu0 %v257
        %261 = vmatprep.subr.mxu0 0.0
        %262 = vmatpush1.msra.mxu0 0.0
        %263 = vmatprep.subr.mxu0 0.0
        %264 = vmatpush1.msra.mxu0 0.0
        %265 = vmatprep.subr.mxu0 0.0
        %266 = vmatpush1.msra.mxu0 0.0
        %267 = vmatprep.subr.mxu0 0.0
        %268 = vmatpush1.msra.mxu0 0.0
        %269 = vmatprep.subr.mxu0 0.0
        %270 = vmatpush1.msra.mxu0 0.0
        %271 = vmatprep.subr.mxu0 0.0
        %272 = vmatpush1.msra.mxu0 0.0
        %273 = vmatprep.subr.mxu0 0.0
        %274 = vmatpush1.msra.mxu0 0.0
        %275 = vmatprep.subr.mxu0 0.0
        %276 = vmatpush1.msra.mxu0 0.0
        %277 = vmatprep.subr.mxu0 0.0
        %278 = vmatpush1.msra.mxu0 0.0
        %279 = vmatprep.subr.mxu0 0.0
        %280 = vmatpush1.msra.mxu0 0.0
        %281 = vmatprep.subr.mxu0 0.0
        %282 = vmatpush1.msra.mxu0 0.0
        %283 = vmatprep.subr.mxu0 0.0
        %284 = vmatpush1.msra.mxu0 0.0
        %285 = vmatprep.subr.mxu0 0.0
        %286 = vmatpush1.msra.mxu0 0.0
        %287 = vmatprep.subr.mxu0 0.0
        %288 = vmatpush1.msra.mxu0 0.0
        %289 = vmatprep.subr.mxu0 0.0
        %290 = vmatpush1.msra.mxu0 0.0
        %291 = vmatprep.subr.mxu0 0.0
        %292 = vmatpush1.msra.mxu0 0.0
        %293 = vmatprep.subr.mxu0 0.0
        %294 = vmatpush1.msra.mxu0 0.0
        %295 = vmatprep.subr.mxu0 0.0
        %296 = vmatpush1.msra.mxu0 0.0
        %297 = vmatprep.subr.mxu0 0.0
        %298 = vmatpush1.msra.mxu0 0.0
        %299 = vmatprep.subr.mxu0 0.0
        %300 = vmatpush1.msra.mxu0 0.0
        %301 = vmatprep.subr.mxu0 0.0
        %302 = vmatpush1.msra.mxu0 0.0
        %303 = vmatprep.subr.mxu0 0.0
        %304 = vmatpush1.msra.mxu0 0.0
        %305 = vmatprep.subr.mxu0 0.0
        %306 = vmatpush1.msra.mxu0 0.0
        %307 = vmatprep.subr.mxu0 0.0
        %308 = vmatpush1.msra.mxu0 0.0
        %309 = vmatprep.subr.mxu0 0.0
        %310 = vmatpush1.msra.mxu0 0.0
        %311 = vmatprep.subr.mxu0 0.0
        %312 = vmatpush1.msra.mxu0 0.0
        %313 = vmatprep.subr.mxu0 0.0
        %314 = vmatpush1.msra.mxu0 0.0
        %315 = vmatprep.subr.mxu0 0.0
        %316 = vmatpush1.msra.mxu0 0.0
        %317 = vmatprep.subr.mxu0 0.0
        %318 = vmatpush1.msra.mxu0 0.0
        %319 = vmatprep.subr.mxu0 0.0
        %320 = vmatpush1.msra.mxu0 0.0
        %321 = vmatprep.subr.mxu0 0.0
        %322 = vmatpush1.msra.mxu0 0.0
        %323 = vmatprep.mubr.f32.mxu0 0.0
        %324 = vmatmul.mubr.f32.gmra.mrb[0].mxu0 %v253
        %v325 = vpop.f32.mrb[0].mxu0
        %v326 = vadd.f32 0.0, %v325
        %v327 = vpop.f32.mrb[0].mxu0
        %328 = vdwg.mxu0
        %v329 = vsel %vm251, %v232, 0
        %v332 = vsel %vm255, %v248, 0
        %334 = vmatprep.subr.mxu0 0.0
        %335 = vmatpush1.msra.mxu0 %v332
        %336 = vmatprep.subr.mxu0 0.0
        %337 = vmatpush1.msra.mxu0 0.0
        %338 = vmatprep.subr.mxu0 0.0
        %339 = vmatpush1.msra.mxu0 0.0
        %340 = vmatprep.subr.mxu0 0.0
        %341 = vmatpush1.msra.mxu0 0.0
        %342 = vmatprep.subr.mxu0 0.0
        %343 = vmatpush1.msra.mxu0 0.0
        %344 = vmatprep.subr.mxu0 0.0
        %345 = vmatpush1.msra.mxu0 0.0
        %346 = vmatprep.subr.mxu0 0.0
        %347 = vmatpush1.msra.mxu0 0.0
        %348 = vmatprep.subr.mxu0 0.0
        %349 = vmatpush1.msra.mxu0 0.0
        %350 = vmatprep.subr.mxu0 0.0
        %351 = vmatpush1.msra.mxu0 0.0
        %352 = vmatprep.subr.mxu0 0.0
        %353 = vmatpush1.msra.mxu0 0.0
        %354 = vmatprep.subr.mxu0 0.0
        %355 = vmatpush1.msra.mxu0 0.0
        %356 = vmatprep.subr.mxu0 0.0
        %357 = vmatpush1.msra.mxu0 0.0
        %358 = vmatprep.subr.mxu0 0.0
        %359 = vmatpush1.msra.mxu0 0.0
        %360 = vmatprep.subr.mxu0 0.0
        %361 = vmatpush1.msra.mxu0 0.0
        %362 = vmatprep.subr.mxu0 0.0
        %363 = vmatpush1.msra.mxu0 0.0
        %364 = vmatprep.subr.mxu0 0.0
        %365 = vmatpush1.msra.mxu0 0.0
        %366 = vmatprep.subr.mxu0 0.0
        %367 = vmatpush1.msra.mxu0 0.0
        %368 = vmatprep.subr.mxu0 0.0
        %369 = vmatpush1.msra.mxu0 0.0
        %370 = vmatprep.subr.mxu0 0.0
        %371 = vmatpush1.msra.mxu0 0.0
        %372 = vmatprep.subr.mxu0 0.0
        %373 = vmatpush1.msra.mxu0 0.0
        %374 = vmatprep.subr.mxu0 0.0
        %375 = vmatpush1.msra.mxu0 0.0
        %376 = vmatprep.subr.mxu0 0.0
        %377 = vmatpush1.msra.mxu0 0.0
        %378 = vmatprep.subr.mxu0 0.0
        %379 = vmatpush1.msra.mxu0 0.0
        %380 = vmatprep.subr.mxu0 0.0
        %381 = vmatpush1.msra.mxu0 0.0
        %382 = vmatprep.subr.mxu0 0.0
        %383 = vmatpush1.msra.mxu0 0.0
        %384 = vmatprep.subr.mxu0 0.0
        %385 = vmatpush1.msra.mxu0 0.0
        %386 = vmatprep.subr.mxu0 0.0
        %387 = vmatpush1.msra.mxu0 0.0
        %388 = vmatprep.subr.mxu0 0.0
        %389 = vmatpush1.msra.mxu0 0.0
        %390 = vmatprep.subr.mxu0 0.0
        %391 = vmatpush1.msra.mxu0 0.0
        %392 = vmatprep.subr.mxu0 0.0
        %393 = vmatpush1.msra.mxu0 0.0
        %394 = vmatprep.subr.mxu0 0.0
        %395 = vmatpush1.msra.mxu0 0.0
        %396 = vmatprep.subr.mxu0 0.0
        %397 = vmatpush1.msra.mxu0 0.0
        %398 = vmatprep.mubr.f32.mxu0 0.0
        %399 = vmatmul.mubr.f32.gmra.mrb[0].mxu0 %v329
        %v400 = vpop.f32.mrb[0].mxu0
        %v401 = vadd.f32 %v326, %v400
        %v402 = vpop.f32.mrb[0].mxu0
        %403 = vdwg.mxu0
        %s404 = scalar_lea.vmem %s2, 8
        %v405 = vld [vmem:[%s404] sm:$0xf]
        %v407 = vsel %vm251, %v247, 0
        %v410 = vsel %vm255, %v405, 0
        %412 = vmatprep.subr.mxu0 0.0
        %413 = vmatpush1.msra.mxu0 %v410
        %414 = vmatprep.subr.mxu0 0.0
        %415 = vmatpush1.msra.mxu0 0.0
        %416 = vmatprep.subr.mxu0 0.0
        %417 = vmatpush1.msra.mxu0 0.0
        %418 = vmatprep.subr.mxu0 0.0
        %419 = vmatpush1.msra.mxu0 0.0
        %420 = vmatprep.subr.mxu0 0.0
        %421 = vmatpush1.msra.mxu0 0.0
        %422 = vmatprep.subr.mxu0 0.0
        %423 = vmatpush1.msra.mxu0 0.0
        %424 = vmatprep.subr.mxu0 0.0
        %425 = vmatpush1.msra.mxu0 0.0
        %426 = vmatprep.subr.mxu0 0.0
        %427 = vmatpush1.msra.mxu0 0.0
        %428 = vmatprep.subr.mxu0 0.0
        %429 = vmatpush1.msra.mxu0 0.0
        %430 = vmatprep.subr.mxu0 0.0
        %431 = vmatpush1.msra.mxu0 0.0
        %432 = vmatprep.subr.mxu0 0.0
        %433 = vmatpush1.msra.mxu0 0.0
        %434 = vmatprep.subr.mxu0 0.0
        %435 = vmatpush1.msra.mxu0 0.0
        %436 = vmatprep.subr.mxu0 0.0
        %437 = vmatpush1.msra.mxu0 0.0
        %438 = vmatprep.subr.mxu0 0.0
        %439 = vmatpush1.msra.mxu0 0.0
        %440 = vmatprep.subr.mxu0 0.0
        %441 = vmatpush1.msra.mxu0 0.0
        %442 = vmatprep.subr.mxu0 0.0
        %443 = vmatpush1.msra.mxu0 0.0
        %444 = vmatprep.subr.mxu0 0.0
        %445 = vmatpush1.msra.mxu0 0.0
        %446 = vmatprep.subr.mxu0 0.0
        %447 = vmatpush1.msra.mxu0 0.0
        %448 = vmatprep.subr.mxu0 0.0
        %449 = vmatpush1.msra.mxu0 0.0
        %450 = vmatprep.subr.mxu0 0.0
        %451 = vmatpush1.msra.mxu0 0.0
        %452 = vmatprep.subr.mxu0 0.0
        %453 = vmatpush1.msra.mxu0 0.0
        %454 = vmatprep.subr.mxu0 0.0
        %455 = vmatpush1.msra.mxu0 0.0
        %456 = vmatprep.subr.mxu0 0.0
        %457 = vmatpush1.msra.mxu0 0.0
        %458 = vmatprep.subr.mxu0 0.0
        %459 = vmatpush1.msra.mxu0 0.0
        %460 = vmatprep.subr.mxu0 0.0
        %461 = vmatpush1.msra.mxu0 0.0
        %462 = vmatprep.subr.mxu0 0.0
        %463 = vmatpush1.msra.mxu0 0.0
        %464 = vmatprep.subr.mxu0 0.0
        %465 = vmatpush1.msra.mxu0 0.0
        %466 = vmatprep.subr.mxu0 0.0
        %467 = vmatpush1.msra.mxu0 0.0
        %468 = vmatprep.subr.mxu0 0.0
        %469 = vmatpush1.msra.mxu0 0.0
        %470 = vmatprep.subr.mxu0 0.0
        %471 = vmatpush1.msra.mxu0 0.0
        %472 = vmatprep.subr.mxu0 0.0
        %473 = vmatpush1.msra.mxu0 0.0
        %474 = vmatprep.subr.mxu0 0.0
        %475 = vmatpush1.msra.mxu0 0.0
        %476 = vmatprep.mubr.f32.mxu0 0.0
        %477 = vmatmul.mubr.f32.gmra.mrb[0].mxu0 %v407
        %v478 = vpop.f32.mrb[0].mxu0
        %v479 = vadd.f32 0.0, %v478
        %v480 = vpop.f32.mrb[0].mxu0
        %481 = vdwg.mxu0
        %v482 = vadd.f32 %v401, %v479
        %vm483 = vcmask 261120
        %484 = vst.msk [vmem:[%s213] sm:$0xff] %vm483, %v482
        %s485 = sand.u32 %s118, 1
        %s486 = scalar_lea.sflag [#allocation3], %s485
        %s487 = sand.u32 %s118, 1
        %s488 = smul.addr %s487, 8
        %s489 = scalar_lea.vmem [#allocation2], %s488
        // Predicated region
        $region33: #{tpu_custom_call.1} parent=31 // pred_check
          %p490 = pneg %p128
        $region34: #{tpu_custom_call.1} parent=31 // pred_check_branch
          %492 = sbr.rel (%p490) target = $region36
        $region35: #{tpu_custom_call.1} parent=31 // pred_region
          %s494 = ssub.s32 128, 128
          %495 = vsyncadd %s486, %s494
          %s496 = sadd.s32 %s22, %s21
          %s497 = smul.addr %s496, 128
          %s498 = scalar_lea.hbm %s3, %s497
          %s500 = sshll.u32 %s489, 4
          %s501 = int_to_ptr.vmem [resolvable:$true] %s500
          %503 = dma.vmem_to_hbm [thread:$0]  %s501, 128, %s498, %s486
        $region36: #{tpu_custom_call.1} parent=31 // pred_fallthru
          _
      $region32: #{tpu_custom_call.1} parent=5 // pred_fallthru
        _
      %p504 = scmp.le.s32.totalorder 2, %s12
      // Predicated region
      $region37: #{tpu_custom_call.1} parent=5 // pred_check
        %p505 = pneg %p504
      $region38: #{tpu_custom_call.1} parent=5 // pred_check_branch
        %507 = sbr.rel (%p505) target = $region40
      $region39: #{tpu_custom_call.1} parent=5 // pred_region
        %s508 = ssub.s32 %s12, 2
        // Predicated region
        $region41: #{tpu_custom_call.1} parent=39 // pred_check
          %p509 = pneg %p134
        $region42: #{tpu_custom_call.1} parent=39 // pred_check_branch
          %511 = sbr.rel (%p509) target = $region44
        $region43: #{tpu_custom_call.1} parent=39 // pred_region
          %s512 = sand.u32 %s119, 1
          %s513 = scalar_lea.sflag [#allocation3], %s512
          %s514 = sand.u32 %s119, 1
          %s515 = smul.addr %s514, 8
          %s516 = scalar_lea.vmem [#allocation2], %s515
          %517 = dma.done %s513, 128
        $region44: #{tpu_custom_call.1} parent=39 // pred_fallthru
          _
      $region40: #{tpu_custom_call.1} parent=5 // pred_fallthru
        _
    $region6: #{tpu_custom_call.1} parent=1 // loop_footer
      %s16 = sadd.s32 1, %s12
    $region7: #{tpu_custom_call.1} parent=1 // loop_footer_branch
      %11 = sbr.rel target = $region3
    $region8: #{tpu_custom_call.1} parent=1 // loop_exit
      _
    %518 = vsyncpa [#allocation3], 1
    %s519 = scalar_lea.sflag [#allocation3], 1
    %520 = vsyncpa %s519, 1

</llo_original>
